<compile_context>
chip_gen: v7x
topology: tpu7x:2x2x1
jax: 0.10.0
libtpu: 0.0.40
codegen_flags: <defaults>
</compile_context>

<pallas_src>
import functools

import jax
import jax.numpy as jnp
from jax.experimental import pallas as pl
from jax.experimental.pallas import tpu as pltpu


def _make_dcph_kernel(n_hidden):
    """Build a kernel for `n_hidden` bias-free hidden Linear+ReLU6 layers."""

    def kernel(*refs):
        # refs = (x_ref, w_0 ... w_{n-1}, we_ref, o_ref)
        # x_ref : (inputdim, TB)        -- batch on lanes.
        # w_k   : (out_k, in_k)         -- PyTorch (out, in) layout, as-is.
        # we_ref: (lastdim, 1)          -- expert weight column.
        # o_ref : (1, TB)               -- lane-dense risk scores.
        x_ref = refs[0]
        w_refs = refs[1:1 + n_hidden]
        we_ref = refs[1 + n_hidden]
        o_ref = refs[2 + n_hidden]

        h = x_ref[...]
        for w_ref in w_refs:
            h = jnp.dot(w_ref[...], h, preferred_element_type=jnp.float32)
            h = jnp.clip(h, 0.0, 6.0)                 # ReLU6 (VPU, f32)

        # Expert head Linear(lastdim, 1, bias=False): broadcast-multiply
        # (VPU) + sublane reduction (XLU) rather than an N=1 MXU matmul.
        o_ref[...] = jnp.sum(h * we_ref[...], axis=0, keepdims=True)

    return kernel


def prep_params(hidden_weights, w_expert):
    """One-time parameter prep, hoisted out of the per-call forward path.

    hidden_weights: list of PyTorch-layout (out_k, in_k) embedding weights.
    w_expert      : (1, lastdim) expert weight.
    The transposed-data kernel consumes the hidden weights as-is; only the
    expert weight is reshaped to a (lastdim, 1) column for the reduction.
    """
    ws = tuple(jnp.asarray(w, jnp.float32) for w in hidden_weights)
    we_col = jnp.asarray(w_expert, jnp.float32).reshape(-1, 1)
    return ws, we_col


@functools.partial(jax.jit, static_argnames=("block_b",))
def deep_coxph_forward(x, hidden_ws, we_col, *, block_b=512):
    """x: (B, inputdim) f32; (hidden_ws, we_col) from prep_params(). -> (B, 1)."""
    B, F = x.shape
    n_hidden = len(hidden_ws)

    # Batch tile: whole batch if small, otherwise a lane-aligned tile.
    if B <= block_b:
        tb = B                                   # single block == full dim
    else:
        assert block_b % 128 == 0, "batch tile must be a multiple of 128"
        tb = block_b
    grid = (pl.cdiv(B, tb),)

    # Lane-dense layout: put the batch dimension on the lane axis.
    xT = x.T                                     # (F, B)

    in_specs = [pl.BlockSpec((F, tb), lambda i: (0, i))]       # x, streamed
    for w in hidden_ws:                                        # weights resident
        in_specs.append(pl.BlockSpec(w.shape, lambda i: (0, 0)))
    in_specs.append(pl.BlockSpec(we_col.shape, lambda i: (0, 0)))

    out = pl.pallas_call(
        _make_dcph_kernel(n_hidden),
        out_shape=jax.ShapeDtypeStruct((1, B), jnp.float32),
        grid=grid,
        in_specs=in_specs,
        out_specs=pl.BlockSpec((1, tb), lambda i: (0, i)),
        compiler_params=pltpu.CompilerParams(
            dimension_semantics=("parallel",)),
    )(xT, *hidden_ws, we_col)

    return out.T                                 # (B, 1), matches PyTorch


def _reference_forward(x, hidden_ws, w_expert):
    h = x
    for w in hidden_ws:
        h = jnp.clip(h @ w.T, 0.0, 6.0)
    return h @ w_expert.T


if __name__ == "__main__":
    # DeepCoxPHTorch(inputdim=32, layers=[64, 32]) -- deterministic init.
    inputdim = 32
    layers = [64, 32]

    key = jax.random.PRNGKey(0)
    k1, k2, k3, k4, kx = jax.random.split(key, 5)

    def uinit(k, out_f, in_f):
        bound = 1.0 / jnp.sqrt(jnp.float32(in_f))
        return jax.random.uniform(k, (out_f, in_f), jnp.float32, -bound, bound)

    w1 = uinit(k1, layers[0], inputdim)          # embedding Linear 1 (out, in)
    w2 = uinit(k2, layers[1], layers[0])         # embedding Linear 2 (out, in)
    w_expert = uinit(k3, 1, layers[1])           # expert head (bias=False)

    hidden_p, we_p = prep_params([w1, w2], w_expert)

    ok = True
    # (batch, batch tile): small single-block, exact multi-block, and a
    # ragged batch whose last block is partial (exercises output masking).
    for batch, blk in ((8, 512), (256, 128), (200, 128)):
        kx, sub = jax.random.split(kx)
        x = jax.random.normal(sub, (batch, inputdim), dtype=jnp.float32)

        out = jax.block_until_ready(
            deep_coxph_forward(x, hidden_p, we_p, block_b=blk))
        ref = _reference_forward(x, [w1, w2], w_expert)

        ok &= out.shape == (batch, 1)
        ok &= bool(jnp.allclose(out, ref, atol=1e-5, rtol=1e-5))

    # layers=[] case: embedding is identity, expert acts on inputdim directly.
    w_expert0 = uinit(k4, 1, inputdim)
    hidden0_p, we0_p = prep_params([], w_expert0)
    kx, sub = jax.random.split(kx)
    x0 = jax.random.normal(sub, (16, inputdim), dtype=jnp.float32)
    out0 = jax.block_until_ready(deep_coxph_forward(x0, hidden0_p, we0_p))
    ref0 = _reference_forward(x0, [], w_expert0)
    ok &= out0.shape == (16, 1)
    ok &= bool(jnp.allclose(out0, ref0, atol=1e-5, rtol=1e-5))

    assert ok, "mismatch vs reference"
    print("KERNEL_OK")
</pallas_src>

<mosaic_0001>
module attributes {stable_mosaic.version = 11 : i64} {
  func.func @kernel(%arg0: i32, %arg1: memref<32x8xf32, #tpu.memory_space<vmem>>, %arg2: memref<64x32xf32, #tpu.memory_space<vmem>>, %arg3: memref<32x64xf32, #tpu.memory_space<vmem>>, %arg4: memref<32x1xf32, #tpu.memory_space<vmem>>, %arg5: memref<1x8xf32, #tpu.memory_space<vmem>>) attributes {dimension_semantics = [#tpu.dimension_semantics<parallel>], iteration_bounds = array<i64: 1>, scalar_prefetch = 0 : i64, scratch_operands = 0 : i64, tpu.core_type = #tpu.core_type<tc>, window_params = [{transform_indices = @transform_0, window_bounds = array<i64: 32, 8>}, {pipeline_mode = #tpu.pipeline_mode<synchronous>, transform_indices = @transform_1, window_bounds = array<i64: 64, 32>}, {pipeline_mode = #tpu.pipeline_mode<synchronous>, transform_indices = @transform_2, window_bounds = array<i64: 32, 64>}, {pipeline_mode = #tpu.pipeline_mode<synchronous>, transform_indices = @transform_3, window_bounds = array<i64: 32, 1>}, {transform_indices = @transform_4, window_bounds = array<i64: 1, 8>}]} {
    %c0 = arith.constant 0 : index
    %c0_0 = arith.constant 0 : index
    %0 = vector.load %arg1[%c0, %c0_0] : memref<32x8xf32, #tpu.memory_space<vmem>>, vector<32x8xf32>
    %c0_1 = arith.constant 0 : index
    %c0_2 = arith.constant 0 : index
    %1 = vector.load %arg2[%c0_1, %c0_2] : memref<64x32xf32, #tpu.memory_space<vmem>>, vector<64x32xf32>
    %cst = arith.constant dense<0.000000e+00> : vector<64x8xf32>
    %2 = tpu.matmul %1, %0, %cst {dimension_numbers = #tpu.dot_dimension_numbers<[1], [0], [0], [1], [0, 0, 1, 1], [], []>} : vector<64x32xf32>, vector<32x8xf32>, vector<64x8xf32> -> vector<64x8xf32>
    %cst_3 = arith.constant 0.000000e+00 : f32
    %cst_4 = arith.constant 6.000000e+00 : f32
    %3 = vector.broadcast %cst_3 : f32 to vector<64x8xf32>
    %4 = arith.maximumf %3, %2 : vector<64x8xf32>
    %5 = vector.broadcast %cst_4 : f32 to vector<64x8xf32>
    %6 = arith.minimumf %5, %4 : vector<64x8xf32>
    %c0_5 = arith.constant 0 : index
    %c0_6 = arith.constant 0 : index
    %7 = vector.load %arg3[%c0_5, %c0_6] : memref<32x64xf32, #tpu.memory_space<vmem>>, vector<32x64xf32>
    %cst_7 = arith.constant dense<0.000000e+00> : vector<32x8xf32>
    %8 = tpu.matmul %7, %6, %cst_7 {dimension_numbers = #tpu.dot_dimension_numbers<[1], [0], [0], [1], [0, 0, 1, 1], [], []>} : vector<32x64xf32>, vector<64x8xf32>, vector<32x8xf32> -> vector<32x8xf32>
    %cst_8 = arith.constant 0.000000e+00 : f32
    %cst_9 = arith.constant 6.000000e+00 : f32
    %9 = vector.broadcast %cst_8 : f32 to vector<32x8xf32>
    %10 = arith.maximumf %9, %8 : vector<32x8xf32>
    %11 = vector.broadcast %cst_9 : f32 to vector<32x8xf32>
    %12 = arith.minimumf %11, %10 : vector<32x8xf32>
    %c0_10 = arith.constant 0 : index
    %c0_11 = arith.constant 0 : index
    %13 = vector.load %arg4[%c0_10, %c0_11] : memref<32x1xf32, #tpu.memory_space<vmem>>, vector<32x1xf32>
    %14 = vector.broadcast %13 : vector<32x1xf32> to vector<32x8xf32>
    %15 = arith.mulf %12, %14 : vector<32x8xf32>
    %cst_12 = arith.constant dense<0.000000e+00> : vector<8xf32>
    %16 = vector.multi_reduction <add>, %15, %cst_12 [0] : vector<32x8xf32> to vector<8xf32>
    %17 = vector.shape_cast %16 : vector<8xf32> to vector<1x8xf32>
    %c0_13 = arith.constant 0 : index
    %c0_14 = arith.constant 0 : index
    %18 = vector.load %arg5[%c0_13, %c0_14] : memref<1x8xf32, #tpu.memory_space<vmem>>, vector<1x8xf32>
    tpu.vector_store %arg5[%c0_13, %c0_14], %17 {strides = array<i32>} : memref<1x8xf32, #tpu.memory_space<vmem>>, vector<1x8xf32>,
    return
  }
  func.func @transform_0(%arg0: i32) -> (i32, i32) {
    %c0_i32 = arith.constant 0 : i32
    %c0_i32_0 = arith.constant 0 : i32
    return %c0_i32, %arg0 : i32, i32
  }
  func.func @transform_1(%arg0: i32) -> (i32, i32) {
    %c0_i32 = arith.constant 0 : i32
    %c0_i32_0 = arith.constant 0 : i32
    %c0_i32_1 = arith.constant 0 : i32
    return %c0_i32, %c0_i32_0 : i32, i32
  }
  func.func @transform_2(%arg0: i32) -> (i32, i32) {
    %c0_i32 = arith.constant 0 : i32
    %c0_i32_0 = arith.constant 0 : i32
    %c0_i32_1 = arith.constant 0 : i32
    return %c0_i32, %c0_i32_0 : i32, i32
  }
  func.func @transform_3(%arg0: i32) -> (i32, i32) {
    %c0_i32 = arith.constant 0 : i32
    %c0_i32_0 = arith.constant 0 : i32
    %c0_i32_1 = arith.constant 0 : i32
    return %c0_i32, %c0_i32_0 : i32, i32
  }
  func.func @transform_4(%arg0: i32) -> (i32, i32) {
    %c0_i32 = arith.constant 0 : i32
    %c0_i32_0 = arith.constant 0 : i32
    return %c0_i32, %arg0 : i32, i32
  }
}

</mosaic_0001>

<llo_original>
// kernel: deep_coxph_forward.1
$region0: #{deep_coxph_forward.1}
  #allocation0 [shape = 'u32[]', space=smem, size = 0x4, offset = 0x4, fixed_abs, tag = 'smem constant byte address 0x4 - core index']
  #allocation1 [shape = 'u32[144,128]{1,0:T(1,128)}', space=vmem, size = 0x12000, scoped, tag = 'internal scratch']
  %s0 = inlined_call_operand.vmem [shape: f32[32,8], index: 0, kind: input, shape index: {}]
  %s1 = inlined_call_operand.vmem [shape: f32[64,32], index: 1, kind: input, shape index: {}]
  %s2 = inlined_call_operand.vmem [shape: f32[32,64], index: 2, kind: input, shape index: {}]
  %s3 = inlined_call_operand.vmem [shape: f32[32,1], index: 3, kind: input, shape index: {}]
  %s4 = inlined_call_operand.hbm [shape: f32[1,8], index: 4, kind: output, shape index: {}]
  %s5 = sld [smem:[#allocation0]]
  $region26: #{deep_coxph_forward.1} parent=0
    _
  %s7 = ssub.s32 1, %s5
  %s8 = scalar_select 0, %s7, %s5
  $region1: #{deep_coxph_forward.1} parent=0
    #allocation2 [shape = 'u8[512]{0}', space=vmem, size = 0x400, scoped, tag = 'output window, operand 0, single buffered']
    #allocation3 [shape = 's32[1]{0}', space=sflag, size = 0x4, scoped, tag = 'scoped memory for deep_coxph_forward.1']
    %9 = vsyncpa [#allocation3], 0
    // Predicated region
    $region2: #{deep_coxph_forward.1} parent=1 // pred_check
      _
    $region3: #{deep_coxph_forward.1} parent=1 // pred_check_branch
      %11 = sbr.rel (0) target = $region5
    $region4: #{deep_coxph_forward.1} parent=1 // pred_region
      _
    $region5: #{deep_coxph_forward.1} parent=1 // pred_fallthru
      _
    // Predicated region
    $region6: #{deep_coxph_forward.1} parent=1 // pred_check
      _
    $region7: #{deep_coxph_forward.1} parent=1 // pred_check_branch
      %13 = sbr.rel (0) target = $region9
    $region8: #{deep_coxph_forward.1} parent=1 // pred_region
      _
    $region9: #{deep_coxph_forward.1} parent=1 // pred_fallthru
      _
    // Predicated region
    $region10: #{deep_coxph_forward.1} parent=1 // pred_check
      _
    $region11: #{deep_coxph_forward.1} parent=1 // pred_check_branch
      %15 = sbr.rel (0) target = $region13
    $region12: #{deep_coxph_forward.1} parent=1 // pred_region
      _
    $region13: #{deep_coxph_forward.1} parent=1 // pred_fallthru
      _
    // Predicated region
    $region14: #{deep_coxph_forward.1} parent=1 // pred_check
      _
    $region15: #{deep_coxph_forward.1} parent=1 // pred_check_branch
      %17 = sbr.rel (0) target = $region17
    $region16: #{deep_coxph_forward.1} parent=1 // pred_region
      _
    $region17: #{deep_coxph_forward.1} parent=1 // pred_fallthru
      _
    %v18 = vld [vmem:[%s0] sm:$0xff]
    %v19 = vld [vmem:[%s0 + $0x8] sm:$0xff]
    %v20 = vld [vmem:[%s0 + $0x10] sm:$0xff]
    %v21 = vld [vmem:[%s0 + $0x18] sm:$0xff]
    %v22 = vld [vmem:[%s1] sm:$0xff]
    %v23 = vld [vmem:[%s1 + $0x8] sm:$0xff]
    %v24 = vld [vmem:[%s1 + $0x10] sm:$0xff]
    %v25 = vld [vmem:[%s1 + $0x18] sm:$0xff]
    %v26 = vld [vmem:[%s1 + $0x20] sm:$0xff]
    %v27 = vld [vmem:[%s1 + $0x28] sm:$0xff]
    %v28 = vld [vmem:[%s1 + $0x30] sm:$0xff]
    %v29 = vld [vmem:[%s1 + $0x38] sm:$0xff]
    %vm30 = vcmask 261120
    %v32 = vsel %vm30, %v22, 0
    %v35 = vsel %vm30, %v23, 0
    %v38 = vsel %vm30, %v24, 0
    %v41 = vsel %vm30, %v25, 0
    %v44 = vsel %vm30, %v26, 0
    %v47 = vsel %vm30, %v27, 0
    %v50 = vsel %vm30, %v28, 0
    %v53 = vsel %vm30, %v29, 0
    %55 = vmatprep.subr.mxu0 0.0
    %56 = vmatpush1.msra.mxu0 %v18
    %57 = vmatprep.subr.mxu0 0.0
    %58 = vmatpush1.msra.mxu0 %v19
    %59 = vmatprep.subr.mxu0 0.0
    %60 = vmatpush1.msra.mxu0 %v20
    %61 = vmatprep.subr.mxu0 0.0
    %62 = vmatpush1.msra.mxu0 %v21
    %63 = vmatprep.subr.mxu0 0.0
    %64 = vmatpush1.msra.mxu0 0.0
    %65 = vmatprep.subr.mxu0 0.0
    %66 = vmatpush1.msra.mxu0 0.0
    %67 = vmatprep.subr.mxu0 0.0
    %68 = vmatpush1.msra.mxu0 0.0
    %69 = vmatprep.subr.mxu0 0.0
    %70 = vmatpush1.msra.mxu0 0.0
    %71 = vmatprep.subr.mxu0 0.0
    %72 = vmatpush1.msra.mxu0 0.0
    %73 = vmatprep.subr.mxu0 0.0
    %74 = vmatpush1.msra.mxu0 0.0
    %75 = vmatprep.subr.mxu0 0.0
    %76 = vmatpush1.msra.mxu0 0.0
    %77 = vmatprep.subr.mxu0 0.0
    %78 = vmatpush1.msra.mxu0 0.0
    %79 = vmatprep.subr.mxu0 0.0
    %80 = vmatpush1.msra.mxu0 0.0
    %81 = vmatprep.subr.mxu0 0.0
    %82 = vmatpush1.msra.mxu0 0.0
    %83 = vmatprep.subr.mxu0 0.0
    %84 = vmatpush1.msra.mxu0 0.0
    %85 = vmatprep.subr.mxu0 0.0
    %86 = vmatpush1.msra.mxu0 0.0
    %87 = vmatprep.subr.mxu0 0.0
    %88 = vmatpush1.msra.mxu0 0.0
    %89 = vmatprep.subr.mxu0 0.0
    %90 = vmatpush1.msra.mxu0 0.0
    %91 = vmatprep.subr.mxu0 0.0
    %92 = vmatpush1.msra.mxu0 0.0
    %93 = vmatprep.subr.mxu0 0.0
    %94 = vmatpush1.msra.mxu0 0.0
    %95 = vmatprep.subr.mxu0 0.0
    %96 = vmatpush1.msra.mxu0 0.0
    %97 = vmatprep.subr.mxu0 0.0
    %98 = vmatpush1.msra.mxu0 0.0
    %99 = vmatprep.subr.mxu0 0.0
    %100 = vmatpush1.msra.mxu0 0.0
    %101 = vmatprep.subr.mxu0 0.0
    %102 = vmatpush1.msra.mxu0 0.0
    %103 = vmatprep.subr.mxu0 0.0
    %104 = vmatpush1.msra.mxu0 0.0
    %105 = vmatprep.subr.mxu0 0.0
    %106 = vmatpush1.msra.mxu0 0.0
    %107 = vmatprep.subr.mxu0 0.0
    %108 = vmatpush1.msra.mxu0 0.0
    %109 = vmatprep.subr.mxu0 0.0
    %110 = vmatpush1.msra.mxu0 0.0
    %111 = vmatprep.subr.mxu0 0.0
    %112 = vmatpush1.msra.mxu0 0.0
    %113 = vmatprep.subr.mxu0 0.0
    %114 = vmatpush1.msra.mxu0 0.0
    %115 = vmatprep.subr.mxu0 0.0
    %116 = vmatpush1.msra.mxu0 0.0
    %117 = vmatprep.subr.mxu0 0.0
    %118 = vmatpush1.msra.mxu0 0.0
    %119 = vmatprep.mubr.f32.mxu0 0.0
    %120 = vmatmul.mubr.f32.gmra.mrb[0].mxu0 %v32
    %v121 = vpop.f32.mrb[0].mxu0
    %v122 = vadd.f32 0.0, %v121
    %v123 = vpop.f32.mrb[0].mxu0
    %124 = vmatprep.mubr.f32.mxu0 0.0
    %125 = vmatmul.mubr.f32.gmra.mrb[0].mxu0 %v35
    %v126 = vpop.f32.mrb[0].mxu0
    %v127 = vadd.f32 0.0, %v126
    %v128 = vpop.f32.mrb[0].mxu0
    %129 = vmatprep.mubr.f32.mxu0 0.0
    %130 = vmatmul.mubr.f32.gmra.mrb[0].mxu0 %v38
    %v131 = vpop.f32.mrb[0].mxu0
    %v132 = vadd.f32 0.0, %v131
    %v133 = vpop.f32.mrb[0].mxu0
    %134 = vmatprep.mubr.f32.mxu0 0.0
    %135 = vmatmul.mubr.f32.gmra.mrb[0].mxu0 %v41
    %v136 = vpop.f32.mrb[0].mxu0
    %v137 = vadd.f32 0.0, %v136
    %v138 = vpop.f32.mrb[0].mxu0
    %139 = vmatprep.mubr.f32.mxu0 0.0
    %140 = vmatmul.mubr.f32.gmra.mrb[0].mxu0 %v44
    %v141 = vpop.f32.mrb[0].mxu0
    %v142 = vadd.f32 0.0, %v141
    %v143 = vpop.f32.mrb[0].mxu0
    %144 = vmatprep.mubr.f32.mxu0 0.0
    %145 = vmatmul.mubr.f32.gmra.mrb[0].mxu0 %v47
    %v146 = vpop.f32.mrb[0].mxu0
    %v147 = vadd.f32 0.0, %v146
    %v148 = vpop.f32.mrb[0].mxu0
    %149 = vmatprep.mubr.f32.mxu0 0.0
    %150 = vmatmul.mubr.f32.gmra.mrb[0].mxu0 %v50
    %v151 = vpop.f32.mrb[0].mxu0
    %v152 = vadd.f32 0.0, %v151
    %v153 = vpop.f32.mrb[0].mxu0
    %154 = vmatprep.mubr.f32.mxu0 0.0
    %155 = vmatmul.mubr.f32.gmra.mrb[0].mxu0 %v53
    %v156 = vpop.f32.mrb[0].mxu0
    %v157 = vadd.f32 0.0, %v156
    %v158 = vpop.f32.mrb[0].mxu0
    %159 = vdwg.mxu0
    %v160 = vmax.f32 %v122, 0.0
    %v161 = vmax.f32 %v127, 0.0
    %v162 = vmax.f32 %v132, 0.0
    %v163 = vmax.f32 %v137, 0.0
    %v164 = vmax.f32 %v142, 0.0
    %v165 = vmax.f32 %v147, 0.0
    %v166 = vmax.f32 %v152, 0.0
    %v167 = vmax.f32 %v157, 0.0
    %v168 = vmin.f32 %v160, 6.0
    %v169 = vmin.f32 %v161, 6.0
    %v170 = vmin.f32 %v162, 6.0
    %v171 = vmin.f32 %v163, 6.0
    %v172 = vmin.f32 %v164, 6.0
    %v173 = vmin.f32 %v165, 6.0
    %v174 = vmin.f32 %v166, 6.0
    %v175 = vmin.f32 %v167, 6.0
    %v176 = vld [vmem:[%s2] sm:$0xff]
    %v177 = vld [vmem:[%s2 + $0x8] sm:$0xff]
    %v178 = vld [vmem:[%s2 + $0x10] sm:$0xff]
    %v179 = vld [vmem:[%s2 + $0x18] sm:$0xff]
    %vm180 = vcmask 523264
    %v182 = vsel %vm180, %v176, 0
    %v185 = vsel %vm180, %v177, 0
    %v188 = vsel %vm180, %v178, 0
    %v191 = vsel %vm180, %v179, 0
    %193 = vmatprep.subr.mxu0 0.0
    %194 = vmatpush1.msra.mxu0 %v168
    %195 = vmatprep.subr.mxu0 0.0
    %196 = vmatpush1.msra.mxu0 %v169
    %197 = vmatprep.subr.mxu0 0.0
    %198 = vmatpush1.msra.mxu0 %v170
    %199 = vmatprep.subr.mxu0 0.0
    %200 = vmatpush1.msra.mxu0 %v171
    %201 = vmatprep.subr.mxu0 0.0
    %202 = vmatpush1.msra.mxu0 %v172
    %203 = vmatprep.subr.mxu0 0.0
    %204 = vmatpush1.msra.mxu0 %v173
    %205 = vmatprep.subr.mxu0 0.0
    %206 = vmatpush1.msra.mxu0 %v174
    %207 = vmatprep.subr.mxu0 0.0
    %208 = vmatpush1.msra.mxu0 %v175
    %209 = vmatprep.subr.mxu0 0.0
    %210 = vmatpush1.msra.mxu0 0.0
    %211 = vmatprep.subr.mxu0 0.0
    %212 = vmatpush1.msra.mxu0 0.0
    %213 = vmatprep.subr.mxu0 0.0
    %214 = vmatpush1.msra.mxu0 0.0
    %215 = vmatprep.subr.mxu0 0.0
    %216 = vmatpush1.msra.mxu0 0.0
    %217 = vmatprep.subr.mxu0 0.0
    %218 = vmatpush1.msra.mxu0 0.0
    %219 = vmatprep.subr.mxu0 0.0
    %220 = vmatpush1.msra.mxu0 0.0
    %221 = vmatprep.subr.mxu0 0.0
    %222 = vmatpush1.msra.mxu0 0.0
    %223 = vmatprep.subr.mxu0 0.0
    %224 = vmatpush1.msra.mxu0 0.0
    %225 = vmatprep.subr.mxu0 0.0
    %226 = vmatpush1.msra.mxu0 0.0
    %227 = vmatprep.subr.mxu0 0.0
    %228 = vmatpush1.msra.mxu0 0.0
    %229 = vmatprep.subr.mxu0 0.0
    %230 = vmatpush1.msra.mxu0 0.0
    %231 = vmatprep.subr.mxu0 0.0
    %232 = vmatpush1.msra.mxu0 0.0
    %233 = vmatprep.subr.mxu0 0.0
    %234 = vmatpush1.msra.mxu0 0.0
    %235 = vmatprep.subr.mxu0 0.0
    %236 = vmatpush1.msra.mxu0 0.0
    %237 = vmatprep.subr.mxu0 0.0
    %238 = vmatpush1.msra.mxu0 0.0
    %239 = vmatprep.subr.mxu0 0.0
    %240 = vmatpush1.msra.mxu0 0.0
    %241 = vmatprep.subr.mxu0 0.0
    %242 = vmatpush1.msra.mxu0 0.0
    %243 = vmatprep.subr.mxu0 0.0
    %244 = vmatpush1.msra.mxu0 0.0
    %245 = vmatprep.subr.mxu0 0.0
    %246 = vmatpush1.msra.mxu0 0.0
    %247 = vmatprep.subr.mxu0 0.0
    %248 = vmatpush1.msra.mxu0 0.0
    %249 = vmatprep.subr.mxu0 0.0
    %250 = vmatpush1.msra.mxu0 0.0
    %251 = vmatprep.subr.mxu0 0.0
    %252 = vmatpush1.msra.mxu0 0.0
    %253 = vmatprep.subr.mxu0 0.0
    %254 = vmatpush1.msra.mxu0 0.0
    %255 = vmatprep.subr.mxu0 0.0
    %256 = vmatpush1.msra.mxu0 0.0
    %257 = vmatprep.mubr.f32.mxu0 0.0
    %258 = vmatmul.mubr.f32.gmra.mrb[0].mxu0 %v182
    %v259 = vpop.f32.mrb[0].mxu0
    %v260 = vadd.f32 0.0, %v259
    %v261 = vpop.f32.mrb[0].mxu0
    %262 = vmatprep.mubr.f32.mxu0 0.0
    %263 = vmatmul.mubr.f32.gmra.mrb[0].mxu0 %v185
    %v264 = vpop.f32.mrb[0].mxu0
    %v265 = vadd.f32 0.0, %v264
    %v266 = vpop.f32.mrb[0].mxu0
    %267 = vmatprep.mubr.f32.mxu0 0.0
    %268 = vmatmul.mubr.f32.gmra.mrb[0].mxu0 %v188
    %v269 = vpop.f32.mrb[0].mxu0
    %v270 = vadd.f32 0.0, %v269
    %v271 = vpop.f32.mrb[0].mxu0
    %272 = vmatprep.mubr.f32.mxu0 0.0
    %273 = vmatmul.mubr.f32.gmra.mrb[0].mxu0 %v191
    %v274 = vpop.f32.mrb[0].mxu0
    %v275 = vadd.f32 0.0, %v274
    %v276 = vpop.f32.mrb[0].mxu0
    %277 = vdwg.mxu0
    %v278 = vmax.f32 %v260, 0.0
    %v279 = vmax.f32 %v265, 0.0
    %v280 = vmax.f32 %v270, 0.0
    %v281 = vmax.f32 %v275, 0.0
    %v282 = vmin.f32 %v278, 6.0
    %v283 = vmin.f32 %v279, 6.0
    %v284 = vmin.f32 %v280, 6.0
    %v285 = vmin.f32 %v281, 6.0
    %v286 = vld [vmem:[%s3] sm:$0xff]
    %v287 = vld [vmem:[%s3 + $0x8] sm:$0xff]
    %v288 = vld [vmem:[%s3 + $0x10] sm:$0xff]
    %v289 = vld [vmem:[%s3 + $0x18] sm:$0xff]
    %291 = vset.pattern.permute.xlu0 0
    %292 = vperm.xlu0 %291, %v286
    %v293 = vpop.permute.xlu0 %292
    %296 = vset.pattern.permute.xlu0 0
    %297 = vperm.xlu0 %296, %v287
    %v298 = vpop.permute.xlu0 %297
    %301 = vset.pattern.permute.xlu0 0
    %302 = vperm.xlu0 %301, %v288
    %v303 = vpop.permute.xlu0 %302
    %306 = vset.pattern.permute.xlu0 0
    %307 = vperm.xlu0 %306, %v289
    %v308 = vpop.permute.xlu0 %307
    %v310 = vmul.f32 %v282, %v293
    %v311 = vmul.f32 %v283, %v298
    %v312 = vmul.f32 %v284, %v303
    %v313 = vmul.f32 %v285, %v308
    %vm314 = vcmask 64512
    %v315 = vsel %vm314, %v310, 0.0
    %v316 = vsel %vm314, %v311, 0.0
    %v317 = vadd.f32 %v315, %v316
    %v318 = vsel %vm314, %v312, 0.0
    %v319 = vadd.f32 %v317, %v318
    %v320 = vsel %vm314, %v313, 0.0
    %v321 = vadd.f32 %v319, %v320
    %v322 = vrot.slane %v321, 4
    %v323 = vadd.f32 %v321, %v322
    %v324 = vrot.slane %v323, 2
    %v325 = vadd.f32 %v323, %v324
    %v326 = vrot.slane %v325, 1
    %v327 = vadd.f32 %v325, %v326
    %vm328 = vcmask 57344
    %329 = vst.msk [vmem:[#allocation2] sm:$0x1] %vm328, %v327
    // Predicated region
    $region18: #{deep_coxph_forward.1} parent=1 // pred_check
      _
    $region19: #{deep_coxph_forward.1} parent=1 // pred_check_branch
      %331 = sbr.rel (0) target = $region21
    $region20: #{deep_coxph_forward.1} parent=1 // pred_region
      %s333 = ssub.s32 16, 16
      %334 = vsyncadd [#allocation3], %s333
      %s336 = sshll.u32 [#allocation2], 4
      %s337 = int_to_ptr.vmem [resolvable:$true] %s336
      %339 = dma.vmem_to_hbm [thread:$0]  %s337, 16, %s4, [#allocation3]
    $region21: #{deep_coxph_forward.1} parent=1 // pred_fallthru
      _
    // Predicated region
    $region22: #{deep_coxph_forward.1} parent=1 // pred_check
      _
    $region23: #{deep_coxph_forward.1} parent=1 // pred_check_branch
      %341 = sbr.rel (0) target = $region25
    $region24: #{deep_coxph_forward.1} parent=1 // pred_region
      %342 = dma.done [#allocation3], 16
    $region25: #{deep_coxph_forward.1} parent=1 // pred_fallthru
      _
    %343 = vsyncpa [#allocation3], 1

</llo_original>
